<compile_context>
chip_gen: v7x
topology: tpu7x:2x2x1
jax: 0.10.0
libtpu: 0.0.40
codegen_flags: <defaults>
</compile_context>

<pallas_src>
import jax
import jax.numpy as jnp
from jax import lax
from jax.experimental import pallas as pl
from jax.experimental.pallas import tpu as pltpu


# ----------------------------------------------------------------------------
# Pallas kernel: y = x + 1, plus sparse corrections from SMEM.
# ----------------------------------------------------------------------------
def _induction_kernel(rows_ref, deltas_ref, x_ref, o_ref):
    dtype = x_ref.dtype
    tm, cols = o_ref.shape

    # Dense part: x + ones_like(x).
    y = x_ref[...] + jnp.asarray(1.0, dtype)

    # Sparse corrections: for each weight (row r, delta d), add d at (r, 0)
    # if r falls inside this row-block.  The weight table is tiny, so a
    # static unrolled loop of masked adds is free filler under the HBM
    # streaming cost (VPU has plenty of slack in a memory-bound kernel).
    block_start = pl.program_id(0) * tm
    row_ids = block_start + lax.broadcasted_iota(jnp.int32, (tm, cols), 0)
    col_ids = lax.broadcasted_iota(jnp.int32, (tm, cols), 1)

    n_weights = rows_ref.shape[0]
    for k in range(n_weights):
        r = rows_ref[k]          # int32 scalar from SMEM
        d = deltas_ref[k]        # float32 scalar from SMEM
        hit = (row_ids == r) & (col_ids == 0)
        y = y + jnp.where(hit, d, jnp.float32(0.0)).astype(dtype)

    o_ref[...] = y


def _weight_table(induction_weights, C, dtype):
    """Dedup (i, j) entries (last value wins, matching .set semantics) and
    convert to (flat_row_index, delta=v-1) arrays for SMEM prefetch."""
    table = {}
    for i, j, v in induction_weights:
        table[(j, i)] = float(v)
    if table:
        row_idx = [j * C + i for (j, i) in table.keys()]
        deltas = [v - 1.0 for v in table.values()]
    else:
        # Dummy entry that never matches any row (row_ids >= 0).
        row_idx, deltas = [-1], [0.0]
    return (jnp.asarray(row_idx, dtype=jnp.int32),
            jnp.asarray(deltas, dtype=jnp.float32))


def induction_forward(x, induction_weights):
    """y = X + induction_matrix, without ever materializing the matrix."""
    B, C, H, W = x.shape
    rows, cols = B * C, H * W

    row_idx, deltas = _weight_table(induction_weights, C, x.dtype)

    # View as (B*C, H*W): sublane axis = B*C, lane axis = H*W (lane-dense
    # as long as H*W is a multiple of 128; 256 here).
    x2 = x.reshape(rows, cols)

    # Row-tile sizing: biggest tile up to 512 rows that stays within a
    # conservative ~4 MiB per-buffer budget (safe for v7x's smaller scoped
    # VMEM, with only one input stream double-buffered).
    bytes_per_row = cols * x.dtype.itemsize
    budget_rows = max(8, (4 * 1024 * 1024) // max(1, bytes_per_row))
    tm = min(rows, 512, budget_rows)
    if tm < rows:
        tm = max(8, (tm // 8) * 8)      # keep sublane-aligned when tiling
    n_blocks = pl.cdiv(rows, tm)

    out2 = pl.pallas_call(
        _induction_kernel,
        out_shape=jax.ShapeDtypeStruct((rows, cols), x.dtype),
        grid_spec=pltpu.PrefetchScalarGridSpec(
            num_scalar_prefetch=2,            # (row_idx, deltas) -> SMEM
            grid=(n_blocks,),
            in_specs=[
                pl.BlockSpec((tm, cols), lambda i, rows_ref, deltas_ref: (i, 0)),
            ],
            out_specs=pl.BlockSpec((tm, cols), lambda i, rows_ref, deltas_ref: (i, 0)),
        ),
        compiler_params=pltpu.CompilerParams(
            # Independent row-blocks: shard across the 2 TCs on v7x.
            dimension_semantics=("parallel",),
        ),
    )(row_idx, deltas, x2)

    return out2.reshape(B, C, H, W)


# ----------------------------------------------------------------------------
# Reference (plain JAX, mirrors the PyTorch module exactly).
# ----------------------------------------------------------------------------
def _reference(x, induction_weights):
    m = jnp.ones_like(x)
    for i, j, v in induction_weights:
        m = m.at[j, i, 0, 0].set(jnp.asarray(v, dtype=x.dtype))
    return x + m


if __name__ == "__main__":
    # Deterministic "parameters": list of (i=channel, j=batch, v=value),
    # including a duplicate (i, j) entry to exercise .set (last-wins) semantics.
    induction_weights = [
        (0, 0, 2.0),
        (1, 1, 3.0),
        (2, 0, 0.5),
        (3, 1, -1.25),
        (2, 0, 4.5),   # duplicate of (2, 0): last value must win
    ]

    key = jax.random.PRNGKey(0)
    B, C, H, W = 2, 4, 16, 16
    x = jax.random.normal(key, (B, C, H, W), dtype=jnp.float32)

    y = induction_forward(x, induction_weights)
    jax.block_until_ready(y)

    y_ref = _reference(x, induction_weights)
    assert jnp.allclose(y, y_ref, atol=1e-6), "mismatch vs reference"

    print("KERNEL_OK")
</pallas_src>

<mosaic_0001>
module attributes {stable_mosaic.version = 11 : i64} {
  func.func @_induction_kernel(%arg0: i32, %arg1: memref<4xi32, #tpu.memory_space<smem>>, %arg2: memref<4xf32, #tpu.memory_space<smem>>, %arg3: memref<8x256xf32, #tpu.memory_space<vmem>>, %arg4: memref<8x256xf32, #tpu.memory_space<vmem>>) attributes {dimension_semantics = [#tpu.dimension_semantics<parallel>], iteration_bounds = array<i64: 1>, scalar_prefetch = 2 : i64, scratch_operands = 0 : i64, tpu.core_type = #tpu.core_type<tc>, window_params = [{transform_indices = @transform_0, window_bounds = array<i64: 8, 256>}, {transform_indices = @transform_1, window_bounds = array<i64: 8, 256>}]} {
    %c0 = arith.constant 0 : index
    %c0_0 = arith.constant 0 : index
    %0 = vector.load %arg3[%c0, %c0_0] : memref<8x256xf32, #tpu.memory_space<vmem>>, vector<8x256xf32>
    %cst = arith.constant 1.000000e+00 : f32
    %1 = vector.broadcast %cst : f32 to vector<8x256xf32>
    %2 = arith.addf %0, %1 : vector<8x256xf32>
    %c8_i32 = arith.constant 8 : i32
    %3 = arith.muli %arg0, %c8_i32 : i32
    %4 = tpu.iota {dimensions = array<i32: 0>} : vector<8x256xi32>
    %5 = vector.broadcast %3 : i32 to vector<8x256xi32>
    %6 = arith.addi %5, %4 : vector<8x256xi32>
    %7 = tpu.iota {dimensions = array<i32: 1>} : vector<8x256xi32>
    %c0_1 = arith.constant 0 : index
    %8 = memref.load %arg1[%c0_1] : memref<4xi32, #tpu.memory_space<smem>>
    %c0_2 = arith.constant 0 : index
    %9 = memref.load %arg2[%c0_2] : memref<4xf32, #tpu.memory_space<smem>>
    %10 = vector.broadcast %8 : i32 to vector<8x256xi32>
    %11 = arith.cmpi eq, %6, %10 : vector<8x256xi32>
    %c0_i32 = arith.constant 0 : i32
    %12 = vector.broadcast %c0_i32 : i32 to vector<8x256xi32>
    %13 = arith.cmpi eq, %7, %12 : vector<8x256xi32>
    %14 = arith.andi %11, %13 : vector<8x256xi1>
    %cst_3 = arith.constant 0.000000e+00 : f32
    %15 = vector.broadcast %9 : f32 to vector<8x256xf32>
    %16 = vector.broadcast %cst_3 : f32 to vector<8x256xf32>
    %17 = arith.select %14, %15, %16 : vector<8x256xi1>, vector<8x256xf32>
    %18 = arith.addf %2, %17 : vector<8x256xf32>
    %c1 = arith.constant 1 : index
    %19 = memref.load %arg1[%c1] : memref<4xi32, #tpu.memory_space<smem>>
    %c1_4 = arith.constant 1 : index
    %20 = memref.load %arg2[%c1_4] : memref<4xf32, #tpu.memory_space<smem>>
    %21 = vector.broadcast %19 : i32 to vector<8x256xi32>
    %22 = arith.cmpi eq, %6, %21 : vector<8x256xi32>
    %c0_i32_5 = arith.constant 0 : i32
    %23 = vector.broadcast %c0_i32_5 : i32 to vector<8x256xi32>
    %24 = arith.cmpi eq, %7, %23 : vector<8x256xi32>
    %25 = arith.andi %22, %24 : vector<8x256xi1>
    %cst_6 = arith.constant 0.000000e+00 : f32
    %26 = vector.broadcast %20 : f32 to vector<8x256xf32>
    %27 = vector.broadcast %cst_6 : f32 to vector<8x256xf32>
    %28 = arith.select %25, %26, %27 : vector<8x256xi1>, vector<8x256xf32>
    %29 = arith.addf %18, %28 : vector<8x256xf32>
    %c2 = arith.constant 2 : index
    %30 = memref.load %arg1[%c2] : memref<4xi32, #tpu.memory_space<smem>>
    %c2_7 = arith.constant 2 : index
    %31 = memref.load %arg2[%c2_7] : memref<4xf32, #tpu.memory_space<smem>>
    %32 = vector.broadcast %30 : i32 to vector<8x256xi32>
    %33 = arith.cmpi eq, %6, %32 : vector<8x256xi32>
    %c0_i32_8 = arith.constant 0 : i32
    %34 = vector.broadcast %c0_i32_8 : i32 to vector<8x256xi32>
    %35 = arith.cmpi eq, %7, %34 : vector<8x256xi32>
    %36 = arith.andi %33, %35 : vector<8x256xi1>
    %cst_9 = arith.constant 0.000000e+00 : f32
    %37 = vector.broadcast %31 : f32 to vector<8x256xf32>
    %38 = vector.broadcast %cst_9 : f32 to vector<8x256xf32>
    %39 = arith.select %36, %37, %38 : vector<8x256xi1>, vector<8x256xf32>
    %40 = arith.addf %29, %39 : vector<8x256xf32>
    %c3 = arith.constant 3 : index
    %41 = memref.load %arg1[%c3] : memref<4xi32, #tpu.memory_space<smem>>
    %c3_10 = arith.constant 3 : index
    %42 = memref.load %arg2[%c3_10] : memref<4xf32, #tpu.memory_space<smem>>
    %43 = vector.broadcast %41 : i32 to vector<8x256xi32>
    %44 = arith.cmpi eq, %6, %43 : vector<8x256xi32>
    %c0_i32_11 = arith.constant 0 : i32
    %45 = vector.broadcast %c0_i32_11 : i32 to vector<8x256xi32>
    %46 = arith.cmpi eq, %7, %45 : vector<8x256xi32>
    %47 = arith.andi %44, %46 : vector<8x256xi1>
    %cst_12 = arith.constant 0.000000e+00 : f32
    %48 = vector.broadcast %42 : f32 to vector<8x256xf32>
    %49 = vector.broadcast %cst_12 : f32 to vector<8x256xf32>
    %50 = arith.select %47, %48, %49 : vector<8x256xi1>, vector<8x256xf32>
    %51 = arith.addf %40, %50 : vector<8x256xf32>
    %c0_13 = arith.constant 0 : index
    %c0_14 = arith.constant 0 : index
    %52 = vector.load %arg4[%c0_13, %c0_14] : memref<8x256xf32, #tpu.memory_space<vmem>>, vector<8x256xf32>
    tpu.vector_store %arg4[%c0_13, %c0_14], %51 {strides = array<i32>} : memref<8x256xf32, #tpu.memory_space<vmem>>, vector<8x256xf32>,
    return
  }
  func.func @transform_0(%arg0: i32, %arg1: memref<4xi32, #tpu.memory_space<smem>>, %arg2: memref<4xf32, #tpu.memory_space<smem>>) -> (i32, i32) {
    %c0_i32 = arith.constant 0 : i32
    %c0_i32_0 = arith.constant 0 : i32
    return %arg0, %c0_i32 : i32, i32
  }
  func.func @transform_1(%arg0: i32, %arg1: memref<4xi32, #tpu.memory_space<smem>>, %arg2: memref<4xf32, #tpu.memory_space<smem>>) -> (i32, i32) {
    %c0_i32 = arith.constant 0 : i32
    %c0_i32_0 = arith.constant 0 : i32
    return %arg0, %c0_i32 : i32, i32
  }
}

</mosaic_0001>

<llo_original>
// kernel: tpu_custom_call.1
$region0: #{tpu_custom_call.1}
  #allocation0 [shape = 'u32[]', space=smem, size = 0x4, offset = 0x4, fixed_abs, tag = 'smem constant byte address 0x4 - core index']
  #allocation1 [shape = 'u32[144,128]{1,0:T(1,128)}', space=vmem, size = 0x12000, scoped, tag = 'internal scratch']
  #allocation2 [shape = 's32[1]{0}', space=sflag, size = 0x4, scoped, tag = 'scoped memory for tpu_custom_call.1']
  #allocation3 [shape = 'u8[512]{0}', space=smem, size = 0x200, scoped, tag = 'prefetched SMEM operand 0']
  #allocation4 [shape = 'u8[512]{0}', space=smem, size = 0x200, scoped, tag = 'prefetched SMEM operand 1']
  %s0 = inlined_call_operand.hbm [shape: s32[4], index: 0, kind: input, shape index: {}]
  %s1 = inlined_call_operand.vmem [shape: f32[4], index: 1, kind: input, shape index: {}]
  %s2 = inlined_call_operand.hbm [shape: f32[8,256], index: 2, kind: input, shape index: {}]
  %s3 = inlined_call_operand.hbm [shape: f32[8,256], index: 3, kind: output, shape index: {}]
  %s4 = sld [smem:[#allocation0]]
  $region18: #{tpu_custom_call.1} parent=0
    _
  %s6 = ssub.s32 1, %s4
  %s7 = scalar_select 0, %s6, %s4
  %9 = dma.hbm_to_smem %s0, 16, [#allocation3], [#allocation2]
  %s10 = sshll.u32 %s1, 4
  %s11 = int_to_ptr.vmem [resolvable:$true] %s10
  %13 = dma.vmem_to_smem %s11, 16, [#allocation4], [#allocation2]
  %14 = dma.done [#allocation2], 32
  %15 = sfence
  $region1: #{tpu_custom_call.1} parent=0
    #allocation5 [shape = 'u8[8192]{0}', space=vmem, size = 0x2000, scoped, tag = 'input window, operand 2, single buffered']
    #allocation6 [shape = 's32[1]{0}', space=sflag, size = 0x4, scoped, tag = 'scoped memory for tpu_custom_call.1']
    #allocation7 [shape = 's32[1]{0}', space=sflag, size = 0x4, scoped, tag = 'scoped memory for tpu_custom_call.1']
    #allocation8 [shape = 'u8[8192]{0}', space=vmem, size = 0x2000, scoped, tag = 'output window, operand 0, single buffered']
    %16 = vsyncpa [#allocation6], 0
    %17 = vsyncpa [#allocation7], 0
    // Predicated region
    $region2: #{tpu_custom_call.1} parent=1 // pred_check
      _
    $region3: #{tpu_custom_call.1} parent=1 // pred_check_branch
      %19 = sbr.rel (0) target = $region5
    $region4: #{tpu_custom_call.1} parent=1 // pred_region
      %s21 = ssub.s32 256, 256
      %22 = vsyncadd [#allocation6], %s21
      %s24 = sshll.u32 [#allocation5], 4
      %s25 = int_to_ptr.vmem [resolvable:$true] %s24
      %27 = dma.hbm_to_vmem [thread:$0]  %s2, 256, %s25, [#allocation6]
    $region5: #{tpu_custom_call.1} parent=1 // pred_fallthru
      _
    // Predicated region
    $region6: #{tpu_custom_call.1} parent=1 // pred_check
      _
    $region7: #{tpu_custom_call.1} parent=1 // pred_check_branch
      %29 = sbr.rel (0) target = $region9
    $region8: #{tpu_custom_call.1} parent=1 // pred_region
      %30 = dma.done [#allocation6], 256
    $region9: #{tpu_custom_call.1} parent=1 // pred_fallthru
      _
    %v31 = vld [vmem:[#allocation5] sm:$0xff]
    %v32 = vld [vmem:[#allocation5 + $0x8] sm:$0xff]
    %v33 = vadd.f32 %v31, 1.0
    %v34 = vadd.f32 %v32, 1.0
    %s35 = smul.u32 0, 8
    %v36 = vlaneseq
    %v37 = vshrl.u32 %v36, 7
    %v38 = vstv %s35
    %v39 = vadd.s32 %v38, %v37
    %v40 = vlaneseq
    %v41 = vand.u32 %v40, 127
    %v42 = vadd.s32 %v41, 128
    %s43 = sld [smem:[#allocation3]]
    %s44 = sld [smem:[#allocation4]]
    %v45 = vstv %s43
    %vm46 = vcmp.eq.s32.totalorder %v39, %v45
    %vm47 = vcmp.eq.s32.totalorder %v41, 0
    %vm48 = vcmp.eq.s32.totalorder %v42, 0
    %vm49 = vmand %vm46, %vm47
    %vm50 = vmand %vm46, %vm48
    %v51 = vstv %s44
    %v52 = vsel %vm49, %v51, 0.0
    %v53 = vsel %vm50, %v51, 0.0
    %v54 = vadd.f32 %v33, %v52
    %v55 = vadd.f32 %v34, %v53
    %s56 = sld [smem:[#allocation3 + $0x1]]
    %s57 = sld [smem:[#allocation4 + $0x1]]
    %v58 = vstv %s56
    %vm59 = vcmp.eq.s32.totalorder %v39, %v58
    %vm60 = vmand %vm59, %vm47
    %vm61 = vmand %vm59, %vm48
    %v62 = vstv %s57
    %v63 = vsel %vm60, %v62, 0.0
    %v64 = vsel %vm61, %v62, 0.0
    %v65 = vadd.f32 %v54, %v63
    %v66 = vadd.f32 %v55, %v64
    %s67 = sld [smem:[#allocation3 + $0x2]]
    %s68 = sld [smem:[#allocation4 + $0x2]]
    %v69 = vstv %s67
    %vm70 = vcmp.eq.s32.totalorder %v39, %v69
    %vm71 = vmand %vm70, %vm47
    %vm72 = vmand %vm70, %vm48
    %v73 = vstv %s68
    %v74 = vsel %vm71, %v73, 0.0
    %v75 = vsel %vm72, %v73, 0.0
    %v76 = vadd.f32 %v65, %v74
    %v77 = vadd.f32 %v66, %v75
    %s78 = sld [smem:[#allocation3 + $0x3]]
    %s79 = sld [smem:[#allocation4 + $0x3]]
    %v80 = vstv %s78
    %vm81 = vcmp.eq.s32.totalorder %v39, %v80
    %vm82 = vmand %vm81, %vm47
    %vm83 = vmand %vm81, %vm48
    %v84 = vstv %s79
    %v85 = vsel %vm82, %v84, 0.0
    %v86 = vsel %vm83, %v84, 0.0
    %v87 = vadd.f32 %v76, %v85
    %v88 = vadd.f32 %v77, %v86
    %89 = vst [vmem:[#allocation8] sm:$0xff] %v87
    %90 = vst [vmem:[#allocation8 + $0x8] sm:$0xff] %v88
    // Predicated region
    $region10: #{tpu_custom_call.1} parent=1 // pred_check
      _
    $region11: #{tpu_custom_call.1} parent=1 // pred_check_branch
      %92 = sbr.rel (0) target = $region13
    $region12: #{tpu_custom_call.1} parent=1 // pred_region
      %s94 = ssub.s32 256, 256
      %95 = vsyncadd [#allocation7], %s94
      %s97 = sshll.u32 [#allocation8], 4
      %s98 = int_to_ptr.vmem [resolvable:$true] %s97
      %100 = dma.vmem_to_hbm [thread:$0]  %s98, 256, %s3, [#allocation7]
    $region13: #{tpu_custom_call.1} parent=1 // pred_fallthru
      _
    // Predicated region
    $region14: #{tpu_custom_call.1} parent=1 // pred_check
      _
    $region15: #{tpu_custom_call.1} parent=1 // pred_check_branch
      %102 = sbr.rel (0) target = $region17
    $region16: #{tpu_custom_call.1} parent=1 // pred_region
      %103 = dma.done [#allocation7], 256
    $region17: #{tpu_custom_call.1} parent=1 // pred_fallthru
      _
    %104 = vsyncpa [#allocation6], 1
    %105 = vsyncpa [#allocation7], 1

</llo_original>
